<compile_context>
chip_gen: v5e
topology: v5e:2x2
jax: 0.10.0
libtpu: 0.0.40
codegen_flags: <defaults>
</compile_context>

<pallas_src>
import math
import jax
import jax.numpy as jnp
from jax import lax
from jax.experimental import pallas as pl
from jax.experimental.pallas import tpu as pltpu


# ---------------------------------------------------------------------------
# in-kernel math helpers (all f32 on the VPU/EUP)
# ---------------------------------------------------------------------------
def _erf(x):
    # Abramowitz & Stegun 7.1.26 rational approximation (max abs err ~1.5e-7,
    # i.e. float32-exact).  PyTorch nn.GELU() defaults to the exact (erf) GELU;
    # a tanh-approx GELU would move work to the EUP but breaks erf parity.
    a1, a2, a3, a4, a5 = 0.254829592, -0.284496736, 1.421413741, -1.453152027, 1.061405429
    p = 0.3275911
    s = jnp.where(x >= 0.0, 1.0, -1.0)
    ax = jnp.abs(x)
    t = 1.0 / (1.0 + p * ax)
    poly = ((((a5 * t + a4) * t + a3) * t + a2) * t + a1) * t
    return s * (1.0 - poly * jnp.exp(-ax * ax))


def _gelu_exact(x):
    return 0.5 * x * (1.0 + _erf(x * 0.7071067811865476))


def _silu(x):
    return x * (1.0 / (1.0 + jnp.exp(-x)))


def _layer_norm(x, g, b, eps=1e-5):
    mu = jnp.mean(x, axis=-1, keepdims=True)
    xc = x - mu
    var = jnp.mean(xc * xc, axis=-1, keepdims=True)
    return xc * lax.rsqrt(var + eps) * g + b


# ---------------------------------------------------------------------------
# fused RQ-VAE forward kernel
# ---------------------------------------------------------------------------
def rqvae_kernel(
    x_ref,                      # (B, D)   f32
    w_enc1_ref,                 # (D, M)   bf16  Linear(in_dim, mlp_dim, bias=False)
    ln1_g_ref, ln1_b_ref,       # (1, M)   f32   LayerNorm(mlp_dim)
    blk_ln_g_ref, blk_ln_b_ref, # (1, M)   f32   Block.norm
    w_fc12_ref,                 # (M, 2H)  bf16  fused [c_fc1 | c_fc2]
    w_proj_ref,                 # (H, M)   bf16  MLP.c_proj (no bias)
    w_enc2pin_ref,              # (M, L)   bf16  pre-folded enc-out Linear @ project_in
    b_pin_ref,                  # (1, L)   f32   project_in bias
    cb_ref,                     # (Q, K, L) f32  per-level codebooks
    c_sq_ref,                   # (Q, 1, K) f32  precomputed ||codebook||^2
    w_pout_ref, b_pout_ref,     # (L, D), (1, D) f32  project_out
    xhat_ref,                   # out: (B, D)    f32
    idx_ref,                    # out: (B, Q)    int32
    closs_ref,                  # out: (1, Q)    f32
    codes_ref,                  # out: (B, Q*L)  f32  (reshaped to (Q,B,L) in wrapper)
):
    f32 = jnp.float32
    bf16 = jnp.bfloat16
    x = x_ref[...]
    B = x.shape[0]
    Q, K, L = cb_ref.shape
    H = w_proj_ref.shape[0]

    # ---------------- Encoder (bf16 MXU operands, f32 accumulation) ----------
    h = jnp.dot(x.astype(bf16), w_enc1_ref[...], preferred_element_type=f32)   # (B, M)
    h = _gelu_exact(h)
    h = _layer_norm(h, ln1_g_ref[...], ln1_b_ref[...])

    # Block: x + c_proj(silu(fc1(ln(x))) * fc2(ln(x)))  -- fc1/fc2 fused
    hn = _layer_norm(h, blk_ln_g_ref[...], blk_ln_b_ref[...])
    ab = jnp.dot(hn.astype(bf16), w_fc12_ref[...], preferred_element_type=f32)  # (B, 2H)
    a = ab[:, :H]
    b = ab[:, H:]
    m = _silu(a) * b
    h = h + jnp.dot(m.astype(bf16), w_proj_ref[...], preferred_element_type=f32)

    # z = enc_out(h); r = project_in(z) + b  -- single folded matmul
    r = (jnp.dot(h.astype(bf16), w_enc2pin_ref[...], preferred_element_type=f32)
         + b_pin_ref[...])                                                     # (B, L)

    # ---------------- Residual VQ (kept in f32 for argmin robustness) --------
    residual = r
    quant_sum = jnp.zeros((B, L), f32)
    ids = lax.broadcasted_iota(jnp.int32, (B, K), 1)

    idx_cols, closs_cols, code_cols = [], [], []

    for q in range(Q):                                       # static unroll, Q small
        cb = cb_ref[q]                                       # (K, L)
        c_sq = c_sq_ref[q]                                   # (1, K)

        sim = lax.dot_general(residual, cb, (((1,), (1,)), ((), ())),
                              preferred_element_type=f32)    # (B, K)
        dist = c_sq - 2.0 * sim                              # argmin == argmin of full ||r-c||^2

        # argmin (first occurrence) via min + iota compare
        d_min = jnp.min(dist, axis=-1, keepdims=True)
        idx = jnp.min(jnp.where(dist <= d_min, ids, K),
                      axis=-1, keepdims=True)                # (B, 1) int32

        # codebook gather via one-hot matmul on the MXU
        onehot = (ids == idx).astype(f32)                    # (B, K)
        codes = jnp.dot(onehot, cb, preferred_element_type=f32)  # (B, L)

        # commitment loss: mse(stop_grad(codes), residual) -- forward value only
        diff = codes - residual
        closs_cols.append(jnp.mean(diff * diff, keepdims=True))  # (1, 1)
        idx_cols.append(idx)
        code_cols.append(codes)

        quant_sum = quant_sum + codes
        residual = residual - codes

    # single lane-coalesced writeback after the loop
    idx_ref[...] = jnp.concatenate(idx_cols, axis=-1)        # (B, Q)
    closs_ref[...] = jnp.concatenate(closs_cols, axis=-1)    # (1, Q)
    codes_ref[...] = jnp.concatenate(code_cols, axis=-1)     # (B, Q*L)

    xhat_ref[...] = (jnp.dot(quant_sum, w_pout_ref[...], preferred_element_type=f32)
                     + b_pout_ref[...]).astype(xhat_ref.dtype)


# ---------------------------------------------------------------------------
# wrapper: parameter setup (PyTorch layout), folding, pallas_call
# ---------------------------------------------------------------------------
def init_params(key, D, M, H, L, K, Q):
    ks = jax.random.split(key, 10)

    def lin(k, fan_in, shape):
        bound = 1.0 / math.sqrt(fan_in)
        return jax.random.uniform(k, shape, jnp.float32, -bound, bound)

    return dict(
        w_enc1=lin(ks[0], D, (D, M)),
        ln1_g=jnp.ones((1, M), jnp.float32),
        ln1_b=jnp.zeros((1, M), jnp.float32),
        blk_ln_g=jnp.ones((1, M), jnp.float32),
        blk_ln_b=jnp.zeros((1, M), jnp.float32),
        w_fc1=lin(ks[1], M, (M, H)),
        w_fc2=lin(ks[2], M, (M, H)),
        w_proj=lin(ks[3], H, (H, M)),
        w_enc2=lin(ks[4], M, (M, D)),
        w_pin=lin(ks[5], D, (D, L)),
        b_pin=lin(ks[6], D, (1, L)),
        # TODO(synk): kmeans_init of codebooks is a training-time procedure;
        # codebooks are initialized deterministically at random instead.
        codebooks=jax.random.normal(ks[7], (Q, K, L), jnp.float32),
        w_pout=lin(ks[8], L, (L, D)),
        b_pout=lin(ks[9], L, (1, D)),
    )


def prepare_params(p):
    """One-time folding/casting of the PyTorch-layout params into kernel form."""
    bf16 = jnp.bfloat16
    return dict(
        w_enc1=p["w_enc1"].astype(bf16),
        ln1_g=p["ln1_g"], ln1_b=p["ln1_b"],
        blk_ln_g=p["blk_ln_g"], blk_ln_b=p["blk_ln_b"],
        # fuse c_fc1 / c_fc2 into one (M, 2H) weight -> single MXU fill
        w_fc12=jnp.concatenate([p["w_fc1"], p["w_fc2"]], axis=1).astype(bf16),
        w_proj=p["w_proj"].astype(bf16),
        # fold Encoder output Linear into ResidualVQ.project_in (z never emitted)
        w_enc2pin=jnp.dot(p["w_enc2"], p["w_pin"]).astype(bf16),
        b_pin=p["b_pin"],
        codebooks=p["codebooks"],
        # hoist ||c||^2 off the per-level serial chain
        c_sq=jnp.sum(p["codebooks"] * p["codebooks"], axis=-1)[:, None, :],
        w_pout=p["w_pout"],
        b_pout=p["b_pout"],
    )


def rqvae_forward(x, kp):
    B, D = x.shape
    Q, K, L = kp["codebooks"].shape
    vmem = pl.BlockSpec(memory_space=pltpu.MemorySpace.VMEM)
    args = (
        x, kp["w_enc1"], kp["ln1_g"], kp["ln1_b"], kp["blk_ln_g"], kp["blk_ln_b"],
        kp["w_fc12"], kp["w_proj"], kp["w_enc2pin"], kp["b_pin"],
        kp["codebooks"], kp["c_sq"], kp["w_pout"], kp["b_pout"],
    )
    out_shape = (
        jax.ShapeDtypeStruct((B, D), jnp.float32),      # x_hat
        jax.ShapeDtypeStruct((B, Q), jnp.int32),        # indices
        jax.ShapeDtypeStruct((1, Q), jnp.float32),      # commit losses (lane-dense)
        jax.ShapeDtypeStruct((B, Q * L), jnp.float32),  # all codes, lane-dense slab
    )
    # Single grid point, everything VMEM-resident (~0.2 MB).  If batch ever
    # scales, add a grid over B with dimension_semantics=("parallel",) so v7x
    # shards rows across its two TensorCores.
    xhat, indices, closs, codes_slab = pl.pallas_call(
        rqvae_kernel,
        out_shape=out_shape,
        in_specs=[vmem] * len(args),
        out_specs=(vmem, vmem, vmem, vmem),
    )(*args)
    all_codes = codes_slab.reshape(B, Q, L).transpose(1, 0, 2)   # (Q, B, L)
    return xhat, indices, closs[0], all_codes


if __name__ == "__main__":
    # small shapes consistent with the module (Encoder dims shrunk from 512/1024)
    B, D = 8, 64          # batch, item_embed_dim / Encoder in_dim
    M, H = 128, 64        # Encoder mlp_dim, mlp_hidden_dim
    Q, K, L = 3, 64, 16   # codebook_n_levels, codebook_size, rqvae_latent_dim

    key = jax.random.PRNGKey(0)
    k_x, k_p = jax.random.split(key)
    x = jax.random.normal(k_x, (B, D), jnp.float32)
    params = init_params(k_p, D, M, H, L, K, Q)
    kparams = prepare_params(params)

    x_hat, indices, commit_loss, all_codes = rqvae_forward(x, kparams)
    jax.block_until_ready((x_hat, indices, commit_loss, all_codes))

    assert x_hat.shape == (B, D)
    assert indices.shape == (B, Q) and indices.dtype == jnp.int32
    assert commit_loss.shape == (Q,)
    assert all_codes.shape == (Q, B, L)
    print("KERNEL_OK")
</pallas_src>

<mosaic_0001>
module attributes {stable_mosaic.version = 11 : i64} {
  func.func @rqvae_kernel(%arg0: memref<8x64xf32, #tpu.memory_space<vmem>>, %arg1: memref<64x128xbf16, #tpu.memory_space<vmem>>, %arg2: memref<1x128xf32, #tpu.memory_space<vmem>>, %arg3: memref<1x128xf32, #tpu.memory_space<vmem>>, %arg4: memref<1x128xf32, #tpu.memory_space<vmem>>, %arg5: memref<1x128xf32, #tpu.memory_space<vmem>>, %arg6: memref<128x128xbf16, #tpu.memory_space<vmem>>, %arg7: memref<64x128xbf16, #tpu.memory_space<vmem>>, %arg8: memref<128x16xbf16, #tpu.memory_space<vmem>>, %arg9: memref<1x16xf32, #tpu.memory_space<vmem>>, %arg10: memref<3x64x16xf32, #tpu.memory_space<vmem>>, %arg11: memref<3x1x64xf32, #tpu.memory_space<vmem>>, %arg12: memref<16x64xf32, #tpu.memory_space<vmem>>, %arg13: memref<1x64xf32, #tpu.memory_space<vmem>>, %arg14: memref<8x64xf32, #tpu.memory_space<vmem>>, %arg15: memref<8x3xi32, #tpu.memory_space<vmem>>, %arg16: memref<1x3xf32, #tpu.memory_space<vmem>>, %arg17: memref<8x48xf32, #tpu.memory_space<vmem>>) attributes {dimension_semantics = [], scalar_prefetch = 0 : i64, scratch_operands = 0 : i64, tpu.core_type = #tpu.core_type<tc>} {
    %c0 = arith.constant 0 : index
    %c0_0 = arith.constant 0 : index
    %0 = vector.load %arg0[%c0, %c0_0] : memref<8x64xf32, #tpu.memory_space<vmem>>, vector<8x64xf32>
    %1 = arith.truncf %0 : vector<8x64xf32> to vector<8x64xbf16>
    %c0_1 = arith.constant 0 : index
    %c0_2 = arith.constant 0 : index
    %2 = vector.load %arg1[%c0_1, %c0_2] : memref<64x128xbf16, #tpu.memory_space<vmem>>, vector<64x128xbf16>
    %cst = arith.constant dense<0.000000e+00> : vector<8x128xf32>
    %3 = tpu.matmul %1, %2, %cst {dimension_numbers = #tpu.dot_dimension_numbers<[1], [0], [0], [1], [0, 0, 1, 1], [], []>} : vector<8x64xbf16>, vector<64x128xbf16>, vector<8x128xf32> -> vector<8x128xf32>
    %cst_3 = arith.constant 5.000000e-01 : f32
    %4 = vector.broadcast %cst_3 : f32 to vector<8x128xf32>
    %5 = arith.mulf %4, %3 : vector<8x128xf32>
    %cst_4 = arith.constant 0.707106769 : f32
    %6 = vector.broadcast %cst_4 : f32 to vector<8x128xf32>
    %7 = arith.mulf %3, %6 : vector<8x128xf32>
    %cst_5 = arith.constant 0.000000e+00 : f32
    %8 = vector.broadcast %cst_5 : f32 to vector<8x128xf32>
    %9 = arith.cmpf oge, %7, %8 : vector<8x128xf32>
    %cst_6 = arith.constant 1.000000e+00 : f32
    %cst_7 = arith.constant -1.000000e+00 : f32
    %10 = vector.broadcast %cst_6 : f32 to vector<8x128xf32>
    %11 = vector.broadcast %cst_7 : f32 to vector<8x128xf32>
    %12 = arith.select %9, %10, %11 : vector<8x128xi1>, vector<8x128xf32>
    %13 = math.absf %7 : vector<8x128xf32>
    %cst_8 = arith.constant 0.327591091 : f32
    %14 = vector.broadcast %cst_8 : f32 to vector<8x128xf32>
    %15 = arith.mulf %14, %13 : vector<8x128xf32>
    %cst_9 = arith.constant 1.000000e+00 : f32
    %16 = vector.broadcast %cst_9 : f32 to vector<8x128xf32>
    %17 = arith.addf %16, %15 : vector<8x128xf32>
    %cst_10 = arith.constant 1.000000e+00 : f32
    %18 = vector.broadcast %cst_10 : f32 to vector<8x128xf32>
    %19 = arith.divf %18, %17 : vector<8x128xf32>
    %cst_11 = arith.constant 1.06140542 : f32
    %20 = vector.broadcast %cst_11 : f32 to vector<8x128xf32>
    %21 = arith.mulf %20, %19 : vector<8x128xf32>
    %cst_12 = arith.constant -1.45315206 : f32
    %22 = vector.broadcast %cst_12 : f32 to vector<8x128xf32>
    %23 = arith.addf %21, %22 : vector<8x128xf32>
    %24 = arith.mulf %23, %19 : vector<8x128xf32>
    %cst_13 = arith.constant 1.42141378 : f32
    %25 = vector.broadcast %cst_13 : f32 to vector<8x128xf32>
    %26 = arith.addf %24, %25 : vector<8x128xf32>
    %27 = arith.mulf %26, %19 : vector<8x128xf32>
    %cst_14 = arith.constant -0.284496725 : f32
    %28 = vector.broadcast %cst_14 : f32 to vector<8x128xf32>
    %29 = arith.addf %27, %28 : vector<8x128xf32>
    %30 = arith.mulf %29, %19 : vector<8x128xf32>
    %cst_15 = arith.constant 0.254829586 : f32
    %31 = vector.broadcast %cst_15 : f32 to vector<8x128xf32>
    %32 = arith.addf %30, %31 : vector<8x128xf32>
    %33 = arith.mulf %32, %19 : vector<8x128xf32>
    %cst_16 = arith.constant 0.000000e+00 : f32
    %34 = vector.broadcast %cst_16 : f32 to vector<8x128xf32>
    %35 = arith.subf %34, %13 : vector<8x128xf32>
    %36 = arith.mulf %35, %13 : vector<8x128xf32>
    %37 = math.exp %36 : vector<8x128xf32>
    %38 = arith.mulf %33, %37 : vector<8x128xf32>
    %cst_17 = arith.constant 1.000000e+00 : f32
    %39 = vector.broadcast %cst_17 : f32 to vector<8x128xf32>
    %40 = arith.subf %39, %38 : vector<8x128xf32>
    %41 = arith.mulf %12, %40 : vector<8x128xf32>
    %cst_18 = arith.constant 1.000000e+00 : f32
    %42 = vector.broadcast %cst_18 : f32 to vector<8x128xf32>
    %43 = arith.addf %42, %41 : vector<8x128xf32>
    %44 = arith.mulf %5, %43 : vector<8x128xf32>
    %c0_19 = arith.constant 0 : index
    %c0_20 = arith.constant 0 : index
    %45 = vector.load %arg2[%c0_19, %c0_20] : memref<1x128xf32, #tpu.memory_space<vmem>>, vector<1x128xf32>
    %c0_21 = arith.constant 0 : index
    %c0_22 = arith.constant 0 : index
    %46 = vector.load %arg3[%c0_21, %c0_22] : memref<1x128xf32, #tpu.memory_space<vmem>>, vector<1x128xf32>
    %cst_23 = arith.constant dense<0.000000e+00> : vector<8xf32>
    %47 = vector.multi_reduction <add>, %44, %cst_23 [1] : vector<8x128xf32> to vector<8xf32>
    %48 = vector.shape_cast %47 : vector<8xf32> to vector<8x1xf32>
    %cst_24 = arith.constant 1.280000e+02 : f32
    %49 = vector.broadcast %cst_24 : f32 to vector<8x1xf32>
    %50 = arith.divf %48, %49 : vector<8x1xf32>
    %51 = vector.broadcast %50 : vector<8x1xf32> to vector<8x128xf32>
    %52 = arith.subf %44, %51 : vector<8x128xf32>
    %53 = arith.mulf %52, %52 : vector<8x128xf32>
    %cst_25 = arith.constant dense<0.000000e+00> : vector<8xf32>
    %54 = vector.multi_reduction <add>, %53, %cst_25 [1] : vector<8x128xf32> to vector<8xf32>
    %55 = vector.shape_cast %54 : vector<8xf32> to vector<8x1xf32>
    %cst_26 = arith.constant 1.280000e+02 : f32
    %56 = vector.broadcast %cst_26 : f32 to vector<8x1xf32>
    %57 = arith.divf %55, %56 : vector<8x1xf32>
    %cst_27 = arith.constant 9.99999974E-6 : f32
    %58 = vector.broadcast %cst_27 : f32 to vector<8x1xf32>
    %59 = arith.addf %57, %58 : vector<8x1xf32>
    %60 = math.rsqrt %59 : vector<8x1xf32>
    %61 = vector.broadcast %60 : vector<8x1xf32> to vector<8x128xf32>
    %62 = arith.mulf %52, %61 : vector<8x128xf32>
    %63 = vector.broadcast %45 : vector<1x128xf32> to vector<8x128xf32>
    %64 = arith.mulf %62, %63 : vector<8x128xf32>
    %65 = vector.broadcast %46 : vector<1x128xf32> to vector<8x128xf32>
    %66 = arith.addf %64, %65 : vector<8x128xf32>
    %c0_28 = arith.constant 0 : index
    %c0_29 = arith.constant 0 : index
    %67 = vector.load %arg4[%c0_28, %c0_29] : memref<1x128xf32, #tpu.memory_space<vmem>>, vector<1x128xf32>
    %c0_30 = arith.constant 0 : index
    %c0_31 = arith.constant 0 : index
    %68 = vector.load %arg5[%c0_30, %c0_31] : memref<1x128xf32, #tpu.memory_space<vmem>>, vector<1x128xf32>
    %cst_32 = arith.constant dense<0.000000e+00> : vector<8xf32>
    %69 = vector.multi_reduction <add>, %66, %cst_32 [1] : vector<8x128xf32> to vector<8xf32>
    %70 = vector.shape_cast %69 : vector<8xf32> to vector<8x1xf32>
    %cst_33 = arith.constant 1.280000e+02 : f32
    %71 = vector.broadcast %cst_33 : f32 to vector<8x1xf32>
    %72 = arith.divf %70, %71 : vector<8x1xf32>
    %73 = vector.broadcast %72 : vector<8x1xf32> to vector<8x128xf32>
    %74 = arith.subf %66, %73 : vector<8x128xf32>
    %75 = arith.mulf %74, %74 : vector<8x128xf32>
    %cst_34 = arith.constant dense<0.000000e+00> : vector<8xf32>
    %76 = vector.multi_reduction <add>, %75, %cst_34 [1] : vector<8x128xf32> to vector<8xf32>
    %77 = vector.shape_cast %76 : vector<8xf32> to vector<8x1xf32>
    %cst_35 = arith.constant 1.280000e+02 : f32
    %78 = vector.broadcast %cst_35 : f32 to vector<8x1xf32>
    %79 = arith.divf %77, %78 : vector<8x1xf32>
    %cst_36 = arith.constant 9.99999974E-6 : f32
    %80 = vector.broadcast %cst_36 : f32 to vector<8x1xf32>
    %81 = arith.addf %79, %80 : vector<8x1xf32>
    %82 = math.rsqrt %81 : vector<8x1xf32>
    %83 = vector.broadcast %82 : vector<8x1xf32> to vector<8x128xf32>
    %84 = arith.mulf %74, %83 : vector<8x128xf32>
    %85 = vector.broadcast %67 : vector<1x128xf32> to vector<8x128xf32>
    %86 = arith.mulf %84, %85 : vector<8x128xf32>
    %87 = vector.broadcast %68 : vector<1x128xf32> to vector<8x128xf32>
    %88 = arith.addf %86, %87 : vector<8x128xf32>
    %89 = arith.truncf %88 : vector<8x128xf32> to vector<8x128xbf16>
    %c0_37 = arith.constant 0 : index
    %c0_38 = arith.constant 0 : index
    %90 = vector.load %arg6[%c0_37, %c0_38] : memref<128x128xbf16, #tpu.memory_space<vmem>>, vector<128x128xbf16>
    %cst_39 = arith.constant dense<0.000000e+00> : vector<8x128xf32>
    %91 = tpu.matmul %89, %90, %cst_39 {dimension_numbers = #tpu.dot_dimension_numbers<[1], [0], [0], [1], [0, 0, 1, 1], [], []>} : vector<8x128xbf16>, vector<128x128xbf16>, vector<8x128xf32> -> vector<8x128xf32>
    %92 = vector.extract_strided_slice %91 {offsets = [0, 0], sizes = [8, 64], strides = [1, 1]} : vector<8x128xf32> to vector<8x64xf32>
    %93 = vector.extract_strided_slice %91 {offsets = [0, 64], sizes = [8, 64], strides = [1, 1]} : vector<8x128xf32> to vector<8x64xf32>
    %cst_40 = arith.constant 0.000000e+00 : f32
    %94 = vector.broadcast %cst_40 : f32 to vector<8x64xf32>
    %95 = arith.subf %94, %92 : vector<8x64xf32>
    %96 = math.exp %95 : vector<8x64xf32>
    %cst_41 = arith.constant 1.000000e+00 : f32
    %97 = vector.broadcast %cst_41 : f32 to vector<8x64xf32>
    %98 = arith.addf %97, %96 : vector<8x64xf32>
    %cst_42 = arith.constant 1.000000e+00 : f32
    %99 = vector.broadcast %cst_42 : f32 to vector<8x64xf32>
    %100 = arith.divf %99, %98 : vector<8x64xf32>
    %101 = arith.mulf %92, %100 : vector<8x64xf32>
    %102 = arith.mulf %101, %93 : vector<8x64xf32>
    %103 = arith.truncf %102 : vector<8x64xf32> to vector<8x64xbf16>
    %c0_43 = arith.constant 0 : index
    %c0_44 = arith.constant 0 : index
    %104 = vector.load %arg7[%c0_43, %c0_44] : memref<64x128xbf16, #tpu.memory_space<vmem>>, vector<64x128xbf16>
    %cst_45 = arith.constant dense<0.000000e+00> : vector<8x128xf32>
    %105 = tpu.matmul %103, %104, %cst_45 {dimension_numbers = #tpu.dot_dimension_numbers<[1], [0], [0], [1], [0, 0, 1, 1], [], []>} : vector<8x64xbf16>, vector<64x128xbf16>, vector<8x128xf32> -> vector<8x128xf32>
    %106 = arith.addf %66, %105 : vector<8x128xf32>
    %107 = arith.truncf %106 : vector<8x128xf32> to vector<8x128xbf16>
    %c0_46 = arith.constant 0 : index
    %c0_47 = arith.constant 0 : index
    %108 = vector.load %arg8[%c0_46, %c0_47] : memref<128x16xbf16, #tpu.memory_space<vmem>>, vector<128x16xbf16>
    %cst_48 = arith.constant dense<0.000000e+00> : vector<8x16xf32>
    %109 = tpu.matmul %107, %108, %cst_48 {dimension_numbers = #tpu.dot_dimension_numbers<[1], [0], [0], [1], [0, 0, 1, 1], [], []>} : vector<8x128xbf16>, vector<128x16xbf16>, vector<8x16xf32> -> vector<8x16xf32>
    %c0_49 = arith.constant 0 : index
    %c0_50 = arith.constant 0 : index
    %110 = vector.load %arg9[%c0_49, %c0_50] : memref<1x16xf32, #tpu.memory_space<vmem>>, vector<1x16xf32>
    %111 = vector.broadcast %110 : vector<1x16xf32> to vector<8x16xf32>
    %112 = arith.addf %109, %111 : vector<8x16xf32>
    %cst_51 = arith.constant 0.000000e+00 : f32
    %113 = vector.broadcast %cst_51 : f32 to vector<8x16xf32>
    %114 = tpu.iota {dimensions = array<i32: 1>} : vector<8x64xi32>
    %c0_52 = arith.constant 0 : index
    %c0_53 = arith.constant 0 : index
    %c0_54 = arith.constant 0 : index
    %115 = vector.load %arg10[%c0_52, %c0_53, %c0_54] : memref<3x64x16xf32, #tpu.memory_space<vmem>>, vector<1x64x16xf32>
    %116 = vector.shape_cast %115 : vector<1x64x16xf32> to vector<64x16xf32>
    %c0_55 = arith.constant 0 : index
    %c0_56 = arith.constant 0 : index
    %c0_57 = arith.constant 0 : index
    %117 = vector.load %arg11[%c0_55, %c0_56, %c0_57] : memref<3x1x64xf32, #tpu.memory_space<vmem>>, vector<1x1x64xf32>
    %118 = vector.shape_cast %117 : vector<1x1x64xf32> to vector<1x64xf32>
    %cst_58 = arith.constant dense<0.000000e+00> : vector<8x64xf32>
    %119 = tpu.matmul %112, %116, %cst_58 {dimension_numbers = #tpu.dot_dimension_numbers<[1], [1], [0], [0], [0, 0, 1, 0], [], []>} : vector<8x16xf32>, vector<64x16xf32>, vector<8x64xf32> -> vector<8x64xf32>
    %cst_59 = arith.constant 2.000000e+00 : f32
    %120 = vector.broadcast %cst_59 : f32 to vector<8x64xf32>
    %121 = arith.mulf %120, %119 : vector<8x64xf32>
    %122 = vector.broadcast %118 : vector<1x64xf32> to vector<8x64xf32>
    %123 = arith.subf %122, %121 : vector<8x64xf32>
    %cst_60 = arith.constant dense<0x7F800000> : vector<8xf32>
    %124 = vector.multi_reduction <minimumf>, %123, %cst_60 [1] : vector<8x64xf32> to vector<8xf32>
    %125 = vector.shape_cast %124 : vector<8xf32> to vector<8x1xf32>
    %126 = vector.broadcast %125 : vector<8x1xf32> to vector<8x64xf32>
    %127 = arith.cmpf ole, %123, %126 : vector<8x64xf32>
    %c64_i32 = arith.constant 64 : i32
    %128 = vector.broadcast %c64_i32 : i32 to vector<8x64xi32>
    %129 = arith.select %127, %114, %128 : vector<8x64xi1>, vector<8x64xi32>
    %cst_61 = arith.constant dense<2147483647> : vector<8xi32>
    %130 = vector.multi_reduction <minsi>, %129, %cst_61 [1] : vector<8x64xi32> to vector<8xi32>
    %131 = vector.shape_cast %130 : vector<8xi32> to vector<8x1xi32>
    %132 = vector.broadcast %131 : vector<8x1xi32> to vector<8x64xi32>
    %133 = arith.cmpi eq, %114, %132 : vector<8x64xi32>
    %134 = arith.extui %133 : vector<8x64xi1> to vector<8x64xi32>
    %135 = arith.sitofp %134 : vector<8x64xi32> to vector<8x64xf32>
    %cst_62 = arith.constant dense<0.000000e+00> : vector<8x16xf32>
    %136 = tpu.matmul %135, %116, %cst_62 {dimension_numbers = #tpu.dot_dimension_numbers<[1], [0], [0], [1], [0, 0, 1, 1], [], []>} : vector<8x64xf32>, vector<64x16xf32>, vector<8x16xf32> -> vector<8x16xf32>
    %137 = arith.subf %136, %112 : vector<8x16xf32>
    %138 = arith.mulf %137, %137 : vector<8x16xf32>
    %139 = vector.shape_cast %138 : vector<8x16xf32> to vector<1x8x16xf32>
    %cst_63 = arith.constant dense<0.000000e+00> : vector<1xf32>
    %140 = vector.multi_reduction <add>, %139, %cst_63 [1, 2] : vector<1x8x16xf32> to vector<1xf32>
    %141 = vector.shape_cast %140 : vector<1xf32> to vector<1x1x1xf32>
    %142 = vector.extract %141[0, 0, 0] : f32 from vector<1x1x1xf32>
    %143 = vector.broadcast %142 : f32 to vector<1x1xf32>
    %cst_64 = arith.constant 1.280000e+02 : f32
    %144 = vector.broadcast %cst_64 : f32 to vector<1x1xf32>
    %145 = arith.divf %143, %144 : vector<1x1xf32>
    %146 = arith.addf %113, %136 : vector<8x16xf32>
    %147 = arith.subf %112, %136 : vector<8x16xf32>
    %c1 = arith.constant 1 : index
    %c0_65 = arith.constant 0 : index
    %c0_66 = arith.constant 0 : index
    %148 = vector.load %arg10[%c1, %c0_65, %c0_66] : memref<3x64x16xf32, #tpu.memory_space<vmem>>, vector<1x64x16xf32>
    %149 = vector.shape_cast %148 : vector<1x64x16xf32> to vector<64x16xf32>
    %c1_67 = arith.constant 1 : index
    %c0_68 = arith.constant 0 : index
    %c0_69 = arith.constant 0 : index
    %150 = vector.load %arg11[%c1_67, %c0_68, %c0_69] : memref<3x1x64xf32, #tpu.memory_space<vmem>>, vector<1x1x64xf32>
    %151 = vector.shape_cast %150 : vector<1x1x64xf32> to vector<1x64xf32>
    %cst_70 = arith.constant dense<0.000000e+00> : vector<8x64xf32>
    %152 = tpu.matmul %147, %149, %cst_70 {dimension_numbers = #tpu.dot_dimension_numbers<[1], [1], [0], [0], [0, 0, 1, 0], [], []>} : vector<8x16xf32>, vector<64x16xf32>, vector<8x64xf32> -> vector<8x64xf32>
    %cst_71 = arith.constant 2.000000e+00 : f32
    %153 = vector.broadcast %cst_71 : f32 to vector<8x64xf32>
    %154 = arith.mulf %153, %152 : vector<8x64xf32>
    %155 = vector.broadcast %151 : vector<1x64xf32> to vector<8x64xf32>
    %156 = arith.subf %155, %154 : vector<8x64xf32>
    %cst_72 = arith.constant dense<0x7F800000> : vector<8xf32>
    %157 = vector.multi_reduction <minimumf>, %156, %cst_72 [1] : vector<8x64xf32> to vector<8xf32>
    %158 = vector.shape_cast %157 : vector<8xf32> to vector<8x1xf32>
    %159 = vector.broadcast %158 : vector<8x1xf32> to vector<8x64xf32>
    %160 = arith.cmpf ole, %156, %159 : vector<8x64xf32>
    %c64_i32_73 = arith.constant 64 : i32
    %161 = vector.broadcast %c64_i32_73 : i32 to vector<8x64xi32>
    %162 = arith.select %160, %114, %161 : vector<8x64xi1>, vector<8x64xi32>
    %cst_74 = arith.constant dense<2147483647> : vector<8xi32>
    %163 = vector.multi_reduction <minsi>, %162, %cst_74 [1] : vector<8x64xi32> to vector<8xi32>
    %164 = vector.shape_cast %163 : vector<8xi32> to vector<8x1xi32>
    %165 = vector.broadcast %164 : vector<8x1xi32> to vector<8x64xi32>
    %166 = arith.cmpi eq, %114, %165 : vector<8x64xi32>
    %167 = arith.extui %166 : vector<8x64xi1> to vector<8x64xi32>
    %168 = arith.sitofp %167 : vector<8x64xi32> to vector<8x64xf32>
    %cst_75 = arith.constant dense<0.000000e+00> : vector<8x16xf32>
    %169 = tpu.matmul %168, %149, %cst_75 {dimension_numbers = #tpu.dot_dimension_numbers<[1], [0], [0], [1], [0, 0, 1, 1], [], []>} : vector<8x64xf32>, vector<64x16xf32>, vector<8x16xf32> -> vector<8x16xf32>
    %170 = arith.subf %169, %147 : vector<8x16xf32>
    %171 = arith.mulf %170, %170 : vector<8x16xf32>
    %172 = vector.shape_cast %171 : vector<8x16xf32> to vector<1x8x16xf32>
    %cst_76 = arith.constant dense<0.000000e+00> : vector<1xf32>
    %173 = vector.multi_reduction <add>, %172, %cst_76 [1, 2] : vector<1x8x16xf32> to vector<1xf32>
    %174 = vector.shape_cast %173 : vector<1xf32> to vector<1x1x1xf32>
    %175 = vector.extract %174[0, 0, 0] : f32 from vector<1x1x1xf32>
    %176 = vector.broadcast %175 : f32 to vector<1x1xf32>
    %cst_77 = arith.constant 1.280000e+02 : f32
    %177 = vector.broadcast %cst_77 : f32 to vector<1x1xf32>
    %178 = arith.divf %176, %177 : vector<1x1xf32>
    %179 = arith.addf %146, %169 : vector<8x16xf32>
    %180 = arith.subf %147, %169 : vector<8x16xf32>
    %c2 = arith.constant 2 : index
    %c0_78 = arith.constant 0 : index
    %c0_79 = arith.constant 0 : index
    %181 = vector.load %arg10[%c2, %c0_78, %c0_79] : memref<3x64x16xf32, #tpu.memory_space<vmem>>, vector<1x64x16xf32>
    %182 = vector.shape_cast %181 : vector<1x64x16xf32> to vector<64x16xf32>
    %c2_80 = arith.constant 2 : index
    %c0_81 = arith.constant 0 : index
    %c0_82 = arith.constant 0 : index
    %183 = vector.load %arg11[%c2_80, %c0_81, %c0_82] : memref<3x1x64xf32, #tpu.memory_space<vmem>>, vector<1x1x64xf32>
    %184 = vector.shape_cast %183 : vector<1x1x64xf32> to vector<1x64xf32>
    %cst_83 = arith.constant dense<0.000000e+00> : vector<8x64xf32>
    %185 = tpu.matmul %180, %182, %cst_83 {dimension_numbers = #tpu.dot_dimension_numbers<[1], [1], [0], [0], [0, 0, 1, 0], [], []>} : vector<8x16xf32>, vector<64x16xf32>, vector<8x64xf32> -> vector<8x64xf32>
    %cst_84 = arith.constant 2.000000e+00 : f32
    %186 = vector.broadcast %cst_84 : f32 to vector<8x64xf32>
    %187 = arith.mulf %186, %185 : vector<8x64xf32>
    %188 = vector.broadcast %184 : vector<1x64xf32> to vector<8x64xf32>
    %189 = arith.subf %188, %187 : vector<8x64xf32>
    %cst_85 = arith.constant dense<0x7F800000> : vector<8xf32>
    %190 = vector.multi_reduction <minimumf>, %189, %cst_85 [1] : vector<8x64xf32> to vector<8xf32>
    %191 = vector.shape_cast %190 : vector<8xf32> to vector<8x1xf32>
    %192 = vector.broadcast %191 : vector<8x1xf32> to vector<8x64xf32>
    %193 = arith.cmpf ole, %189, %192 : vector<8x64xf32>
    %c64_i32_86 = arith.constant 64 : i32
    %194 = vector.broadcast %c64_i32_86 : i32 to vector<8x64xi32>
    %195 = arith.select %193, %114, %194 : vector<8x64xi1>, vector<8x64xi32>
    %cst_87 = arith.constant dense<2147483647> : vector<8xi32>
    %196 = vector.multi_reduction <minsi>, %195, %cst_87 [1] : vector<8x64xi32> to vector<8xi32>
    %197 = vector.shape_cast %196 : vector<8xi32> to vector<8x1xi32>
    %198 = vector.broadcast %197 : vector<8x1xi32> to vector<8x64xi32>
    %199 = arith.cmpi eq, %114, %198 : vector<8x64xi32>
    %200 = arith.extui %199 : vector<8x64xi1> to vector<8x64xi32>
    %201 = arith.sitofp %200 : vector<8x64xi32> to vector<8x64xf32>
    %cst_88 = arith.constant dense<0.000000e+00> : vector<8x16xf32>
    %202 = tpu.matmul %201, %182, %cst_88 {dimension_numbers = #tpu.dot_dimension_numbers<[1], [0], [0], [1], [0, 0, 1, 1], [], []>} : vector<8x64xf32>, vector<64x16xf32>, vector<8x16xf32> -> vector<8x16xf32>
    %203 = arith.subf %202, %180 : vector<8x16xf32>
    %204 = arith.mulf %203, %203 : vector<8x16xf32>
    %205 = vector.shape_cast %204 : vector<8x16xf32> to vector<1x8x16xf32>
    %cst_89 = arith.constant dense<0.000000e+00> : vector<1xf32>
    %206 = vector.multi_reduction <add>, %205, %cst_89 [1, 2] : vector<1x8x16xf32> to vector<1xf32>
    %207 = vector.shape_cast %206 : vector<1xf32> to vector<1x1x1xf32>
    %208 = vector.extract %207[0, 0, 0] : f32 from vector<1x1x1xf32>
    %209 = vector.broadcast %208 : f32 to vector<1x1xf32>
    %cst_90 = arith.constant 1.280000e+02 : f32
    %210 = vector.broadcast %cst_90 : f32 to vector<1x1xf32>
    %211 = arith.divf %209, %210 : vector<1x1xf32>
    %212 = arith.addf %179, %202 : vector<8x16xf32>
    %213 = tpu.concatenate %131, %164, %197 in 1 : vector<8x1xi32>, vector<8x1xi32>, vector<8x1xi32> -> vector<8x3xi32>
    %c0_91 = arith.constant 0 : index
    %c0_92 = arith.constant 0 : index
    %214 = vector.load %arg15[%c0_91, %c0_92] : memref<8x3xi32, #tpu.memory_space<vmem>>, vector<8x3xi32>
    tpu.vector_store %arg15[%c0_91, %c0_92], %213 {strides = array<i32>} : memref<8x3xi32, #tpu.memory_space<vmem>>, vector<8x3xi32>,
    %215 = tpu.concatenate %145, %178, %211 in 1 : vector<1x1xf32>, vector<1x1xf32>, vector<1x1xf32> -> vector<1x3xf32>
    %c0_93 = arith.constant 0 : index
    %c0_94 = arith.constant 0 : index
    %216 = vector.load %arg16[%c0_93, %c0_94] : memref<1x3xf32, #tpu.memory_space<vmem>>, vector<1x3xf32>
    tpu.vector_store %arg16[%c0_93, %c0_94], %215 {strides = array<i32>} : memref<1x3xf32, #tpu.memory_space<vmem>>, vector<1x3xf32>,
    %217 = tpu.concatenate %136, %169, %202 in 1 : vector<8x16xf32>, vector<8x16xf32>, vector<8x16xf32> -> vector<8x48xf32>
    %c0_95 = arith.constant 0 : index
    %c0_96 = arith.constant 0 : index
    %218 = vector.load %arg17[%c0_95, %c0_96] : memref<8x48xf32, #tpu.memory_space<vmem>>, vector<8x48xf32>
    tpu.vector_store %arg17[%c0_95, %c0_96], %217 {strides = array<i32>} : memref<8x48xf32, #tpu.memory_space<vmem>>, vector<8x48xf32>,
    %c0_97 = arith.constant 0 : index
    %c0_98 = arith.constant 0 : index
    %219 = vector.load %arg12[%c0_97, %c0_98] : memref<16x64xf32, #tpu.memory_space<vmem>>, vector<16x64xf32>
    %cst_99 = arith.constant dense<0.000000e+00> : vector<8x64xf32>
    %220 = tpu.matmul %212, %219, %cst_99 {dimension_numbers = #tpu.dot_dimension_numbers<[1], [0], [0], [1], [0, 0, 1, 1], [], []>} : vector<8x16xf32>, vector<16x64xf32>, vector<8x64xf32> -> vector<8x64xf32>
    %c0_100 = arith.constant 0 : index
    %c0_101 = arith.constant 0 : index
    %221 = vector.load %arg13[%c0_100, %c0_101] : memref<1x64xf32, #tpu.memory_space<vmem>>, vector<1x64xf32>
    %222 = vector.broadcast %221 : vector<1x64xf32> to vector<8x64xf32>
    %223 = arith.addf %220, %222 : vector<8x64xf32>
    %c0_102 = arith.constant 0 : index
    %c0_103 = arith.constant 0 : index
    %224 = vector.load %arg14[%c0_102, %c0_103] : memref<8x64xf32, #tpu.memory_space<vmem>>, vector<8x64xf32>
    tpu.vector_store %arg14[%c0_102, %c0_103], %223 {strides = array<i32>} : memref<8x64xf32, #tpu.memory_space<vmem>>, vector<8x64xf32>,
    return
  }
}

</mosaic_0001>

<llo_original>
// kernel: tpu_custom_call.1
$region0: #{tpu_custom_call.1}
  #allocation0 [shape = 'u32[]', space=smem, size = 0x4, offset = 0x4, fixed_abs, tag = 'smem constant byte address 0x4 - core index']
  #allocation1 [shape = 'u32[72,128]{1,0:T(1,128)}', space=vmem, size = 0x9000, scoped, tag = 'internal scratch']
  %s0 = inlined_call_operand.vmem [shape: f32[8,64], index: 0, kind: input, shape index: {}]
  %s1 = inlined_call_operand.vmem [shape: bf16[64,128], index: 1, kind: input, shape index: {}]
  %s2 = inlined_call_operand.vmem [shape: f32[1,128], index: 2, kind: input, shape index: {}]
  %s3 = inlined_call_operand.vmem [shape: f32[1,128], index: 3, kind: input, shape index: {}]
  %s4 = inlined_call_operand.vmem [shape: f32[1,128], index: 4, kind: input, shape index: {}]
  %s5 = inlined_call_operand.vmem [shape: f32[1,128], index: 5, kind: input, shape index: {}]
  %s6 = inlined_call_operand.vmem [shape: bf16[128,128], index: 6, kind: input, shape index: {}]
  %s7 = inlined_call_operand.vmem [shape: bf16[64,128], index: 7, kind: input, shape index: {}]
  %s8 = inlined_call_operand.vmem [shape: bf16[128,16], index: 8, kind: input, shape index: {}]
  %s9 = inlined_call_operand.vmem [shape: f32[1,16], index: 9, kind: input, shape index: {}]
  %s10 = inlined_call_operand.vmem [shape: f32[3,64,16], index: 10, kind: input, shape index: {}]
  %s11 = inlined_call_operand.vmem [shape: f32[3,1,64], index: 11, kind: input, shape index: {}]
  %s12 = inlined_call_operand.vmem [shape: f32[16,64], index: 12, kind: input, shape index: {}]
  %s13 = inlined_call_operand.vmem [shape: f32[1,64], index: 13, kind: input, shape index: {}]
  %s14 = inlined_call_operand.hbm [shape: f32[8,64], index: 14, kind: output, shape index: {0}]
  %s15 = inlined_call_operand.vmem [shape: s32[8,3], index: 15, kind: output, shape index: {1}]
  %s16 = inlined_call_operand.hbm [shape: f32[1,3], index: 16, kind: output, shape index: {2}]
  %s17 = inlined_call_operand.hbm [shape: f32[8,48], index: 17, kind: output, shape index: {3}]
  %18 = xla_tuple %s14, %s15, %s16, %s17
  %s19 = sld [smem:[#allocation0]]
  $region90: #{tpu_custom_call.1} parent=0
    _
  %s21 = ssub.s32 1, %s19
  %s22 = scalar_select 0, %s21, %s19
  $region1: #{tpu_custom_call.1} parent=0
    #allocation2 [shape = 'u8[4096]{0}', space=vmem, size = 0x1000, scoped, tag = 'output window, operand 0, single buffered']
    #allocation3 [shape = 's32[1]{0}', space=sflag, size = 0x4, scoped, tag = 'scoped memory for tpu_custom_call.1']
    #allocation4 [shape = 'u8[512]{0}', space=vmem, size = 0x400, scoped, tag = 'output window, operand 2, single buffered']
    #allocation5 [shape = 's32[1]{0}', space=sflag, size = 0x4, scoped, tag = 'scoped memory for tpu_custom_call.1']
    #allocation6 [shape = 'u8[4096]{0}', space=vmem, size = 0x1000, scoped, tag = 'output window, operand 3, single buffered']
    %23 = vsyncpa [#allocation3], 0
    %24 = vsyncpa [#allocation5], 0
    // Predicated region
    $region2: #{tpu_custom_call.1} parent=1 // pred_check
      _
    $region3: #{tpu_custom_call.1} parent=1 // pred_check_branch
      %26 = sbr.rel (0) target = $region5
    $region4: #{tpu_custom_call.1} parent=1 // pred_region
      _
    $region5: #{tpu_custom_call.1} parent=1 // pred_fallthru
      _
    // Predicated region
    $region6: #{tpu_custom_call.1} parent=1 // pred_check
      _
    $region7: #{tpu_custom_call.1} parent=1 // pred_check_branch
      %28 = sbr.rel (0) target = $region9
    $region8: #{tpu_custom_call.1} parent=1 // pred_region
      _
    $region9: #{tpu_custom_call.1} parent=1 // pred_fallthru
      _
    // Predicated region
    $region10: #{tpu_custom_call.1} parent=1 // pred_check
      _
    $region11: #{tpu_custom_call.1} parent=1 // pred_check_branch
      %30 = sbr.rel (0) target = $region13
    $region12: #{tpu_custom_call.1} parent=1 // pred_region
      _
    $region13: #{tpu_custom_call.1} parent=1 // pred_fallthru
      _
    // Predicated region
    $region14: #{tpu_custom_call.1} parent=1 // pred_check
      _
    $region15: #{tpu_custom_call.1} parent=1 // pred_check_branch
      %32 = sbr.rel (0) target = $region17
    $region16: #{tpu_custom_call.1} parent=1 // pred_region
      _
    $region17: #{tpu_custom_call.1} parent=1 // pred_fallthru
      _
    // Predicated region
    $region18: #{tpu_custom_call.1} parent=1 // pred_check
      _
    $region19: #{tpu_custom_call.1} parent=1 // pred_check_branch
      %34 = sbr.rel (0) target = $region21
    $region20: #{tpu_custom_call.1} parent=1 // pred_region
      _
    $region21: #{tpu_custom_call.1} parent=1 // pred_fallthru
      _
    // Predicated region
    $region22: #{tpu_custom_call.1} parent=1 // pred_check
      _
    $region23: #{tpu_custom_call.1} parent=1 // pred_check_branch
      %36 = sbr.rel (0) target = $region25
    $region24: #{tpu_custom_call.1} parent=1 // pred_region
      _
    $region25: #{tpu_custom_call.1} parent=1 // pred_fallthru
      _
    // Predicated region
    $region26: #{tpu_custom_call.1} parent=1 // pred_check
      _
    $region27: #{tpu_custom_call.1} parent=1 // pred_check_branch
      %38 = sbr.rel (0) target = $region29
    $region28: #{tpu_custom_call.1} parent=1 // pred_region
      _
    $region29: #{tpu_custom_call.1} parent=1 // pred_fallthru
      _
    // Predicated region
    $region30: #{tpu_custom_call.1} parent=1 // pred_check
      _
    $region31: #{tpu_custom_call.1} parent=1 // pred_check_branch
      %40 = sbr.rel (0) target = $region33
    $region32: #{tpu_custom_call.1} parent=1 // pred_region
      _
    $region33: #{tpu_custom_call.1} parent=1 // pred_fallthru
      _
    // Predicated region
    $region34: #{tpu_custom_call.1} parent=1 // pred_check
      _
    $region35: #{tpu_custom_call.1} parent=1 // pred_check_branch
      %42 = sbr.rel (0) target = $region37
    $region36: #{tpu_custom_call.1} parent=1 // pred_region
      _
    $region37: #{tpu_custom_call.1} parent=1 // pred_fallthru
      _
    // Predicated region
    $region38: #{tpu_custom_call.1} parent=1 // pred_check
      _
    $region39: #{tpu_custom_call.1} parent=1 // pred_check_branch
      %44 = sbr.rel (0) target = $region41
    $region40: #{tpu_custom_call.1} parent=1 // pred_region
      _
    $region41: #{tpu_custom_call.1} parent=1 // pred_fallthru
      _
    // Predicated region
    $region42: #{tpu_custom_call.1} parent=1 // pred_check
      _
    $region43: #{tpu_custom_call.1} parent=1 // pred_check_branch
      %46 = sbr.rel (0) target = $region45
    $region44: #{tpu_custom_call.1} parent=1 // pred_region
      _
    $region45: #{tpu_custom_call.1} parent=1 // pred_fallthru
      _
    // Predicated region
    $region46: #{tpu_custom_call.1} parent=1 // pred_check
      _
    $region47: #{tpu_custom_call.1} parent=1 // pred_check_branch
      %48 = sbr.rel (0) target = $region49
    $region48: #{tpu_custom_call.1} parent=1 // pred_region
      _
    $region49: #{tpu_custom_call.1} parent=1 // pred_fallthru
      _
    // Predicated region
    $region50: #{tpu_custom_call.1} parent=1 // pred_check
      _
    $region51: #{tpu_custom_call.1} parent=1 // pred_check_branch
      %50 = sbr.rel (0) target = $region53
    $region52: #{tpu_custom_call.1} parent=1 // pred_region
      _
    $region53: #{tpu_custom_call.1} parent=1 // pred_fallthru
      _
    // Predicated region
    $region54: #{tpu_custom_call.1} parent=1 // pred_check
      _
    $region55: #{tpu_custom_call.1} parent=1 // pred_check_branch
      %52 = sbr.rel (0) target = $region57
    $region56: #{tpu_custom_call.1} parent=1 // pred_region
      _
    $region57: #{tpu_custom_call.1} parent=1 // pred_fallthru
      _
    %v54 = vld [vmem:[%s0] sm:$0xff]
    %v55 = vpack.c.bf16 %v54, %v54
    %v56 = vld [vmem:[%s1] sm:$0xf]
    %v57 = vld [vmem:[%s1 + $0x4] sm:$0xf]
    %v58 = vld [vmem:[%s1 + $0x8] sm:$0xf]
    %v59 = vld [vmem:[%s1 + $0xc] sm:$0xf]
    %v60 = vld [vmem:[%s1 + $0x10] sm:$0xf]
    %v61 = vld [vmem:[%s1 + $0x14] sm:$0xf]
    %v62 = vld [vmem:[%s1 + $0x18] sm:$0xf]
    %v63 = vld [vmem:[%s1 + $0x1c] sm:$0xf]
    %v72 = vunpack.c.l.b16 %v56
    %v73 = vunpack.c.l.b16 %v57
    %v74 = vunpack.c.l.b16 %v58
    %v75 = vunpack.c.l.b16 %v59
    %v76 = vunpack.c.l.b16 %v60
    %v77 = vunpack.c.l.b16 %v61
    %v78 = vunpack.c.l.b16 %v62
    %v79 = vunpack.c.l.b16 %v63
    %v80 = vpack.c.b16 %v73, %v72
    %v81 = vpack.c.b16 %v75, %v74
    %v82 = vpack.c.b16 %v77, %v76
    %v83 = vpack.c.b16 %v79, %v78
    %vm88 = vcmask 523264
    %v90 = vsel %vm88, %v55, 0
    %92 = vmatpush.bf16.msra.mxu0 0
    %93 = vmatpush.bf16.msra.mxu0 0
    %94 = vmatpush.bf16.msra.mxu0 0
    %95 = vmatpush.bf16.msra.mxu0 0
    %96 = vmatpush.bf16.msra.mxu0 %v83
    %97 = vmatpush.bf16.msra.mxu0 %v82
    %98 = vmatpush.bf16.msra.mxu0 %v81
    %99 = vmatpush.bf16.msra.mxu0 %v80
    %100 = vmatmul.bf16.gmra.mxu0 %v90
    %v101 = vpop.f32.mrf.mxu0
    %v102 = vadd.f32 0.0, %v101
    %v103 = vpop.f32.mrf.mxu0
    %104 = vdwg.mxu0
    %v105 = vmul.f32 %v102, 0.5
    %v106 = vmul.f32 %v102, 0.70710677
    %vm107 = vcmp.ge.f32.partialorder %v106, 0.0
    %v108 = vsel %vm107, 1.0, -1.0
    %v109 = vand.u32 2147483647, %v106
    %v110 = vmul.f32 %v109, 0.3275911
    %v111 = vadd.f32 %v110, 1.0
    %v112 = vrcp.pop %v111
    %v113 = vmul.f32 %v111, %v112
    %v114 = vsub.f32 1.0, %v113
    %v115 = vmul.f32 %v112, %v114
    %v116 = vadd.f32 %v112, %v115
    %vm117 = vweird.f32 %v111
    %vm118 = vweird.f32 %v112
    %vm119 = vmor %vm117, %vm118
    %v120 = vsel %vm119, %v112, %v116
    %v121 = vand.u32 2147483647, %v111
    %vm122 = vcmp.eq.f32.partialorder %v121, 8.507059e+37
    %v123 = vand.u32 %v111, 2147483648
    %v124 = vor.u32 1.1754944e-38, %v123
    %v125 = vsel %vm122, %v124, %v120
    %v126 = vmul.f32 1.0, %v125
    %v127 = vmul.f32 %v126, 1.0614054
    %v128 = vadd.f32 %v127, -1.4531521
    %v129 = vmul.f32 %v128, %v126
    %v130 = vadd.f32 %v129, 1.4214138
    %v131 = vmul.f32 %v130, %v126
    %v132 = vadd.f32 %v131, -0.28449672
    %v133 = vmul.f32 %v132, %v126
    %v134 = vadd.f32 %v133, 0.2548296
    %v135 = vmul.f32 %v134, %v126
    %v136 = vsub.f32 0.0, %v109
    %v137 = vmul.f32 %v136, %v109
    %v138 = vmul.f32 %v137, 1.442695
    %v139 = vpow.pop %v138
    %v140 = vmul.f32 %v135, %v139
    %v141 = vsub.f32 1.0, %v140
    %v142 = vmul.f32 %v108, %v141
    %v143 = vadd.f32 %v142, 1.0
    %v144 = vmul.f32 %v105, %v143
    %v145 = vld [vmem:[%s2] sm:$0x1]
    %v146 = vld [vmem:[%s3] sm:$0x1]
    %147 = vadd.xlane.f32.xlu0 %v144
    %v148 = vpop.xlane.xlu0 %147
    %v149 = vrcp.pop 128.0
    %v150 = vmul.f32 128.0, %v149
    %v151 = vsub.f32 1.0, %v150
    %v152 = vmul.f32 %v149, %v151
    %v153 = vadd.f32 %v149, %v152
    %vm154 = vweird.f32 %v149
    %v155 = vsel %vm154, %v149, %v153
    %v156 = vmul.f32 %v148, %v155
    %v157 = vsub.f32 %v144, %v156
    %v158 = vmul.f32 %v157, %v157
    %159 = vadd.xlane.f32.xlu0 %v158
    %v160 = vpop.xlane.xlu0 %159
    %v161 = vmul.f32 %v160, %v155
    %v162 = vadd.f32 %v161, 1e-05
    %v163 = vrsqrt.pop %v162
    %v164 = vmul.f32 %v163, %v162
    %v165 = vmul.f32 %v164, %v163
    %v166 = vmul.f32 0.5, %v165
    %v167 = vsub.f32 1.5, %v166
    %v168 = vmul.f32 %v163, %v167
    %vm169 = vweird.f32 %v162
    %vm170 = vweird.f32 %v163
    %vm171 = vmor %vm169, %vm170
    %v172 = vsel %vm171, %v163, %v168
    %v173 = vmul.f32 %v157, %v172
    %v175 = vperm.slane %v145, 0
    %v177 = vmul.f32 %v173, %v175
    %v179 = vperm.slane %v146, 0
    %v181 = vadd.f32 %v177, %v179
    %v182 = vld [vmem:[%s4] sm:$0x1]
    %v183 = vld [vmem:[%s5] sm:$0x1]
    %184 = vadd.xlane.f32.xlu0 %v181
    %v185 = vpop.xlane.xlu0 %184
    %v186 = vmul.f32 %v185, %v155
    %v187 = vsub.f32 %v181, %v186
    %v188 = vmul.f32 %v187, %v187
    %189 = vadd.xlane.f32.xlu0 %v188
    %v190 = vpop.xlane.xlu0 %189
    %v191 = vmul.f32 %v190, %v155
    %v192 = vadd.f32 %v191, 1e-05
    %v193 = vrsqrt.pop %v192
    %v194 = vmul.f32 %v193, %v192
    %v195 = vmul.f32 %v194, %v193
    %v196 = vmul.f32 0.5, %v195
    %v197 = vsub.f32 1.5, %v196
    %v198 = vmul.f32 %v193, %v197
    %vm199 = vweird.f32 %v192
    %vm200 = vweird.f32 %v193
    %vm201 = vmor %vm199, %vm200
    %v202 = vsel %vm201, %v193, %v198
    %v203 = vmul.f32 %v187, %v202
    %v205 = vperm.slane %v182, 0
    %v207 = vmul.f32 %v203, %v205
    %v209 = vperm.slane %v183, 0
    %v211 = vadd.f32 %v207, %v209
    %v212 = vpack.c.bf16 %v211, %v211
    %v213 = vld [vmem:[%s6] sm:$0xf]
    %v214 = vld [vmem:[%s6 + $0x4] sm:$0xf]
    %v215 = vld [vmem:[%s6 + $0x8] sm:$0xf]
    %v216 = vld [vmem:[%s6 + $0xc] sm:$0xf]
    %v217 = vld [vmem:[%s6 + $0x10] sm:$0xf]
    %v218 = vld [vmem:[%s6 + $0x14] sm:$0xf]
    %v219 = vld [vmem:[%s6 + $0x18] sm:$0xf]
    %v220 = vld [vmem:[%s6 + $0x1c] sm:$0xf]
    %v221 = vld [vmem:[%s6 + $0x20] sm:$0xf]
    %v222 = vld [vmem:[%s6 + $0x24] sm:$0xf]
    %v223 = vld [vmem:[%s6 + $0x28] sm:$0xf]
    %v224 = vld [vmem:[%s6 + $0x2c] sm:$0xf]
    %v225 = vld [vmem:[%s6 + $0x30] sm:$0xf]
    %v226 = vld [vmem:[%s6 + $0x34] sm:$0xf]
    %v227 = vld [vmem:[%s6 + $0x38] sm:$0xf]
    %v228 = vld [vmem:[%s6 + $0x3c] sm:$0xf]
    %v245 = vunpack.c.l.b16 %v213
    %v246 = vunpack.c.l.b16 %v214
    %v247 = vunpack.c.l.b16 %v215
    %v248 = vunpack.c.l.b16 %v216
    %v249 = vunpack.c.l.b16 %v217
    %v250 = vunpack.c.l.b16 %v218
    %v251 = vunpack.c.l.b16 %v219
    %v252 = vunpack.c.l.b16 %v220
    %v253 = vunpack.c.l.b16 %v221
    %v254 = vunpack.c.l.b16 %v222
    %v255 = vunpack.c.l.b16 %v223
    %v256 = vunpack.c.l.b16 %v224
    %v257 = vunpack.c.l.b16 %v225
    %v258 = vunpack.c.l.b16 %v226
    %v259 = vunpack.c.l.b16 %v227
    %v260 = vunpack.c.l.b16 %v228
    %v261 = vpack.c.b16 %v246, %v245
    %v262 = vpack.c.b16 %v248, %v247
    %v263 = vpack.c.b16 %v250, %v249
    %v264 = vpack.c.b16 %v252, %v251
    %v265 = vpack.c.b16 %v254, %v253
    %v266 = vpack.c.b16 %v256, %v255
    %v267 = vpack.c.b16 %v258, %v257
    %v268 = vpack.c.b16 %v260, %v259
    %277 = vmatpush.bf16.msra.mxu0 %v268
    %278 = vmatpush.bf16.msra.mxu0 %v267
    %279 = vmatpush.bf16.msra.mxu0 %v266
    %280 = vmatpush.bf16.msra.mxu0 %v265
    %281 = vmatpush.bf16.msra.mxu0 %v264
    %282 = vmatpush.bf16.msra.mxu0 %v263
    %283 = vmatpush.bf16.msra.mxu0 %v262
    %284 = vmatpush.bf16.msra.mxu0 %v261
    %285 = vmatmul.bf16.gmra.mxu0 %v212
    %v286 = vpop.f32.mrf.mxu0
    %v287 = vadd.f32 0.0, %v286
    %v288 = vpop.f32.mrf.mxu0
    %289 = vdwg.mxu0
    %v290 = vsub.f32 0.0, %v287
    %v291 = vmul.f32 %v290, 1.442695
    %v292 = vpow.pop %v291
    %v293 = vadd.f32 %v292, 1.0
    %v294 = vrcp.pop %v293
    %v295 = vmul.f32 %v293, %v294
    %v296 = vsub.f32 1.0, %v295
    %v297 = vmul.f32 %v294, %v296
    %v298 = vadd.f32 %v294, %v297
    %vm299 = vweird.f32 %v293
    %vm300 = vweird.f32 %v294
    %vm301 = vmor %vm299, %vm300
    %v302 = vsel %vm301, %v294, %v298
    %v303 = vand.u32 2147483647, %v293
    %vm304 = vcmp.eq.f32.partialorder %v303, 8.507059e+37
    %v305 = vand.u32 %v293, 2147483648
    %v306 = vor.u32 1.1754944e-38, %v305
    %v307 = vsel %vm304, %v306, %v302
    %v308 = vmul.f32 1.0, %v307
    %v309 = vmul.f32 %v287, %v308
    %311 = vrot.lane.b32.xlu0 %v287, 64
    %v312 = vpop.permute.xlu0 %311
    %v314 = vmul.f32 %v309, %v312
    %v315 = vpack.c.bf16 %v314, %v314
    %v316 = vld [vmem:[%s7] sm:$0xf]
    %v317 = vld [vmem:[%s7 + $0x4] sm:$0xf]
    %v318 = vld [vmem:[%s7 + $0x8] sm:$0xf]
    %v319 = vld [vmem:[%s7 + $0xc] sm:$0xf]
    %v320 = vld [vmem:[%s7 + $0x10] sm:$0xf]
    %v321 = vld [vmem:[%s7 + $0x14] sm:$0xf]
    %v322 = vld [vmem:[%s7 + $0x18] sm:$0xf]
    %v323 = vld [vmem:[%s7 + $0x1c] sm:$0xf]
    %v332 = vunpack.c.l.b16 %v316
    %v333 = vunpack.c.l.b16 %v317
    %v334 = vunpack.c.l.b16 %v318
    %v335 = vunpack.c.l.b16 %v319
    %v336 = vunpack.c.l.b16 %v320
    %v337 = vunpack.c.l.b16 %v321
    %v338 = vunpack.c.l.b16 %v322
    %v339 = vunpack.c.l.b16 %v323
    %v340 = vpack.c.b16 %v333, %v332
    %v341 = vpack.c.b16 %v335, %v334
    %v342 = vpack.c.b16 %v337, %v336
    %v343 = vpack.c.b16 %v339, %v338
    %v349 = vsel %vm88, %v315, 0
    %351 = vmatpush.bf16.msra.mxu0 0
    %352 = vmatpush.bf16.msra.mxu0 0
    %353 = vmatpush.bf16.msra.mxu0 0
    %354 = vmatpush.bf16.msra.mxu0 0
    %355 = vmatpush.bf16.msra.mxu0 %v343
    %356 = vmatpush.bf16.msra.mxu0 %v342
    %357 = vmatpush.bf16.msra.mxu0 %v341
    %358 = vmatpush.bf16.msra.mxu0 %v340
    %359 = vmatmul.bf16.gmra.mxu0 %v349
    %v360 = vpop.f32.mrf.mxu0
    %v361 = vadd.f32 0.0, %v360
    %v362 = vpop.f32.mrf.mxu0
    %363 = vdwg.mxu0
    %v364 = vadd.f32 %v181, %v361
    %v365 = vpack.c.bf16 %v364, %v364
    %v366 = vld [vmem:[%s8] sm:$0xf]
    %v367 = vld [vmem:[%s8 + $0x4] sm:$0xf]
    %v368 = vld [vmem:[%s8 + $0x8] sm:$0xf]
    %v369 = vld [vmem:[%s8 + $0xc] sm:$0xf]
    %v370 = vld [vmem:[%s8 + $0x10] sm:$0xf]
    %v371 = vld [vmem:[%s8 + $0x14] sm:$0xf]
    %v372 = vld [vmem:[%s8 + $0x18] sm:$0xf]
    %v373 = vld [vmem:[%s8 + $0x1c] sm:$0xf]
    %v374 = vld [vmem:[%s8 + $0x20] sm:$0xf]
    %v375 = vld [vmem:[%s8 + $0x24] sm:$0xf]
    %v376 = vld [vmem:[%s8 + $0x28] sm:$0xf]
    %v377 = vld [vmem:[%s8 + $0x2c] sm:$0xf]
    %v378 = vld [vmem:[%s8 + $0x30] sm:$0xf]
    %v379 = vld [vmem:[%s8 + $0x34] sm:$0xf]
    %v380 = vld [vmem:[%s8 + $0x38] sm:$0xf]
    %v381 = vld [vmem:[%s8 + $0x3c] sm:$0xf]
    %v382 = vld [vmem:[%s9] sm:$0x1]
    %v384 = vperm.slane %v382, 0
    %v402 = vunpack.c.l.b16 %v366
    %v403 = vunpack.c.l.b16 %v367
    %v404 = vunpack.c.l.b16 %v368
    %v405 = vunpack.c.l.b16 %v369
    %v406 = vunpack.c.l.b16 %v370
    %v407 = vunpack.c.l.b16 %v371
    %v408 = vunpack.c.l.b16 %v372
    %v409 = vunpack.c.l.b16 %v373
    %v410 = vunpack.c.l.b16 %v374
    %v411 = vunpack.c.l.b16 %v375
    %v412 = vunpack.c.l.b16 %v376
    %v413 = vunpack.c.l.b16 %v377
    %v414 = vunpack.c.l.b16 %v378
    %v415 = vunpack.c.l.b16 %v379
    %v416 = vunpack.c.l.b16 %v380
    %v417 = vunpack.c.l.b16 %v381
    %v418 = vpack.c.b16 %v403, %v402
    %v419 = vpack.c.b16 %v405, %v404
    %v420 = vpack.c.b16 %v407, %v406
    %v421 = vpack.c.b16 %v409, %v408
    %v422 = vpack.c.b16 %v411, %v410
    %v423 = vpack.c.b16 %v413, %v412
    %v424 = vpack.c.b16 %v415, %v414
    %v425 = vpack.c.b16 %v417, %v416
    %434 = vmatpush.bf16.msra.mxu0 %v425
    %435 = vmatpush.bf16.msra.mxu0 %v424
    %436 = vmatpush.bf16.msra.mxu0 %v423
    %437 = vmatpush.bf16.msra.mxu0 %v422
    %438 = vmatpush.bf16.msra.mxu0 %v421
    %439 = vmatpush.bf16.msra.mxu0 %v420
    %440 = vmatpush.bf16.msra.mxu0 %v419
    %441 = vmatpush.bf16.msra.mxu0 %v418
    %442 = vmatmul.bf16.gmra.mxu0 %v365
    %v443 = vpop.f32.mrf.mxu0
    %v444 = vadd.f32 %v384, %v443
    %v445 = vpop.f32.mrf.mxu0
    %446 = vdwg.mxu0
    %v447 = vlaneseq
    %v448 = vand.u32 %v447, 127
    %v449 = vld [vmem:[%s10] sm:$0xff]
    %v450 = vld [vmem:[%s10 + $0x8] sm:$0xff]
    %v451 = vld [vmem:[%s10 + $0x10] sm:$0xff]
    %v452 = vld [vmem:[%s10 + $0x18] sm:$0xff]
    %v453 = vld [vmem:[%s10 + $0x20] sm:$0xff]
    %v454 = vld [vmem:[%s10 + $0x28] sm:$0xff]
    %v455 = vld [vmem:[%s10 + $0x30] sm:$0xff]
    %v456 = vld [vmem:[%s10 + $0x38] sm:$0xff]
    %v457 = vld [vmem:[%s11] sm:$0x1]
    %vm458 = vcmask 130048
    %v460 = vsel %vm458, %v444, 0
    %v463 = vsel %vm458, %v449, 0
    %v466 = vsel %vm458, %v450, 0
    %v469 = vsel %vm458, %v451, 0
    %v472 = vsel %vm458, %v452, 0
    %v475 = vsel %vm458, %v453, 0
    %v478 = vsel %vm458, %v454, 0
    %v481 = vsel %vm458, %v455, 0
    %v484 = vsel %vm458, %v456, 0
    %486 = vmatpush.xpose.msra.mxu0 0.0
    %487 = vmatpush.xpose.msra.mxu0 0.0
    %488 = vmatpush.xpose.msra.mxu0 0.0
    %489 = vmatpush.xpose.msra.mxu0 0.0
    %490 = vmatpush.xpose.msra.mxu0 0.0
    %491 = vmatpush.xpose.msra.mxu0 0.0
    %492 = vmatpush.xpose.msra.mxu0 0.0
    %493 = vmatpush.xpose.msra.mxu0 0.0
    %494 = vmatpush.xpose.msra.mxu0 %v484
    %495 = vmatpush.xpose.msra.mxu0 %v481
    %496 = vmatpush.xpose.msra.mxu0 %v478
    %497 = vmatpush.xpose.msra.mxu0 %v475
    %498 = vmatpush.xpose.msra.mxu0 %v472
    %499 = vmatpush.xpose.msra.mxu0 %v469
    %500 = vmatpush.xpose.msra.mxu0 %v466
    %501 = vmatpush.xpose.msra.mxu0 %v463
    %502 = vmatmul.f32.gmra.mxu0 %v460
    %v503 = vpop.f32.mrf.mxu0
    %v504 = vadd.f32 0.0, %v503
    %505 = vdwg.mxu0
    %v506 = vmul.f32 %v504, 2.0
    %v508 = vperm.slane %v457, 0
    %v510 = vsub.f32 %v508, %v506
    %v511 = vsel %vm88, %v510, inf
    %512 = vmin.xlane.f32.xlu0 %v511
    %v513 = vpop.xlane.xlu0 %512
    %vm514 = vcmp.le.f32.partialorder %v510, %v513
    %v515 = vsel %vm514, %v448, 64
    %v516 = vsel %vm88, %v515, 2147483647
    %v517 = vand.u32 %v516, 65535
    %v518 = vshra.s32 %v516, 16
    %v519 = vcvt.s32.f32 %v517
    %v520 = vcvt.s32.f32 %v518
    %521 = vmin.xlane.f32.xlu0 %v520
    %v522 = vpop.xlane.xlu0 %521
    %vm523 = vcmp.eq.f32.partialorder %v520, %v522
    %v524 = vsel %vm523, %v519, inf
    %525 = vmin.xlane.f32.xlu0 %v524
    %v526 = vpop.xlane.xlu0 %525
    %v527 = vcvt.f32.s32 %v526
    %v528 = vcvt.f32.s32 %v522
    %v529 = vshll.u32 %v528, 16
    %v530 = vadd.s32 %v529, %v527
    %vm531 = vcmp.eq.s32.totalorder %v448, %v530
    %v532 = vsel %vm531, 1, 0
    %v533 = vcvt.s32.f32 %v532
    %v535 = vsel %vm88, %v533, 0
    %537 = vmatpush.msra.mxu0 0.0
    %538 = vmatpush.msra.mxu0 0.0
    %539 = vmatpush.msra.mxu0 0.0
    %540 = vmatpush.msra.mxu0 0.0
    %541 = vmatpush.msra.mxu0 0.0
    %542 = vmatpush.msra.mxu0 0.0
    %543 = vmatpush.msra.mxu0 0.0
    %544 = vmatpush.msra.mxu0 0.0
    %545 = vmatpush.msra.mxu0 %v456
    %546 = vmatpush.msra.mxu0 %v455
    %547 = vmatpush.msra.mxu0 %v454
    %548 = vmatpush.msra.mxu0 %v453
    %549 = vmatpush.msra.mxu0 %v452
    %550 = vmatpush.msra.mxu0 %v451
    %551 = vmatpush.msra.mxu0 %v450
    %552 = vmatpush.msra.mxu0 %v449
    %553 = vmatmul.f32.gmra.mxu0 %v535
    %v554 = vpop.f32.mrf.mxu0
    %v555 = vadd.f32 0.0, %v554
    %556 = vdwg.mxu0
    %v557 = vsub.f32 %v555, %v444
    %v558 = vmul.f32 %v557, %v557
    %v559 = vsel %vm458, %v558, 0.0
    %560 = vadd.xlane.f32.xlu0 %v559
    %v561 = vpop.xlane.xlu0 %560
    %v562 = vrot.slane %v561, 4
    %v563 = vadd.f32 %v561, %v562
    %v564 = vrot.slane %v563, 2
    %v565 = vadd.f32 %v563, %v564
    %v566 = vrot.slane %v565, 1
    %v567 = vadd.f32 %v565, %v566
    %s568 = vtos %v567
    %v569 = vstv %s568
    %v570 = vmul.f32 %v569, %v155
    %v571 = vadd.f32 %v555, 0.0
    %v572 = vsub.f32 %v444, %v555
    %s573 = scalar_lea.vmem %s10, 64
    %v574 = vld [vmem:[%s573] sm:$0xff]
    %v575 = vld [vmem:[%s573 + $0x8] sm:$0xff]
    %v576 = vld [vmem:[%s573 + $0x10] sm:$0xff]
    %v577 = vld [vmem:[%s573 + $0x18] sm:$0xff]
    %v578 = vld [vmem:[%s573 + $0x20] sm:$0xff]
    %v579 = vld [vmem:[%s573 + $0x28] sm:$0xff]
    %v580 = vld [vmem:[%s573 + $0x30] sm:$0xff]
    %v581 = vld [vmem:[%s573 + $0x38] sm:$0xff]
    %s582 = scalar_lea.vmem %s11, 1
    %v583 = vld [vmem:[%s582] sm:$0x1]
    %v585 = vsel %vm458, %v572, 0
    %v588 = vsel %vm458, %v574, 0
    %v591 = vsel %vm458, %v575, 0
    %v594 = vsel %vm458, %v576, 0
    %v597 = vsel %vm458, %v577, 0
    %v600 = vsel %vm458, %v578, 0
    %v603 = vsel %vm458, %v579, 0
    %v606 = vsel %vm458, %v580, 0
    %v609 = vsel %vm458, %v581, 0
    %611 = vmatpush.xpose.msra.mxu0 0.0
    %612 = vmatpush.xpose.msra.mxu0 0.0
    %613 = vmatpush.xpose.msra.mxu0 0.0
    %614 = vmatpush.xpose.msra.mxu0 0.0
    %615 = vmatpush.xpose.msra.mxu0 0.0
    %616 = vmatpush.xpose.msra.mxu0 0.0
    %617 = vmatpush.xpose.msra.mxu0 0.0
    %618 = vmatpush.xpose.msra.mxu0 0.0
    %619 = vmatpush.xpose.msra.mxu0 %v609
    %620 = vmatpush.xpose.msra.mxu0 %v606
    %621 = vmatpush.xpose.msra.mxu0 %v603
    %622 = vmatpush.xpose.msra.mxu0 %v600
    %623 = vmatpush.xpose.msra.mxu0 %v597
    %624 = vmatpush.xpose.msra.mxu0 %v594
    %625 = vmatpush.xpose.msra.mxu0 %v591
    %626 = vmatpush.xpose.msra.mxu0 %v588
    %627 = vmatmul.f32.gmra.mxu0 %v585
    %v628 = vpop.f32.mrf.mxu0
    %v629 = vadd.f32 0.0, %v628
    %630 = vdwg.mxu0
    %v631 = vmul.f32 %v629, 2.0
    %v633 = vperm.slane %v583, 0
    %v635 = vsub.f32 %v633, %v631
    %v636 = vsel %vm88, %v635, inf
    %637 = vmin.xlane.f32.xlu0 %v636
    %v638 = vpop.xlane.xlu0 %637
    %vm639 = vcmp.le.f32.partialorder %v635, %v638
    %v640 = vsel %vm639, %v448, 64
    %v641 = vsel %vm88, %v640, 2147483647
    %v642 = vand.u32 %v641, 65535
    %v643 = vshra.s32 %v641, 16
    %v644 = vcvt.s32.f32 %v642
    %v645 = vcvt.s32.f32 %v643
    %646 = vmin.xlane.f32.xlu0 %v645
    %v647 = vpop.xlane.xlu0 %646
    %vm648 = vcmp.eq.f32.partialorder %v645, %v647
    %v649 = vsel %vm648, %v644, inf
    %650 = vmin.xlane.f32.xlu0 %v649
    %v651 = vpop.xlane.xlu0 %650
    %v652 = vcvt.f32.s32 %v651
    %v653 = vcvt.f32.s32 %v647
    %v654 = vshll.u32 %v653, 16
    %v655 = vadd.s32 %v654, %v652
    %vm656 = vcmp.eq.s32.totalorder %v448, %v655
    %v657 = vsel %vm656, 1, 0
    %v658 = vcvt.s32.f32 %v657
    %v660 = vsel %vm88, %v658, 0
    %662 = vmatpush.msra.mxu0 0.0
    %663 = vmatpush.msra.mxu0 0.0
    %664 = vmatpush.msra.mxu0 0.0
    %665 = vmatpush.msra.mxu0 0.0
    %666 = vmatpush.msra.mxu0 0.0
    %667 = vmatpush.msra.mxu0 0.0
    %668 = vmatpush.msra.mxu0 0.0
    %669 = vmatpush.msra.mxu0 0.0
    %670 = vmatpush.msra.mxu0 %v581
    %671 = vmatpush.msra.mxu0 %v580
    %672 = vmatpush.msra.mxu0 %v579
    %673 = vmatpush.msra.mxu0 %v578
    %674 = vmatpush.msra.mxu0 %v577
    %675 = vmatpush.msra.mxu0 %v576
    %676 = vmatpush.msra.mxu0 %v575
    %677 = vmatpush.msra.mxu0 %v574
    %678 = vmatmul.f32.gmra.mxu0 %v660
    %v679 = vpop.f32.mrf.mxu0
    %v680 = vadd.f32 0.0, %v679
    %681 = vdwg.mxu0
    %v682 = vsub.f32 %v680, %v572
    %v683 = vmul.f32 %v682, %v682
    %v684 = vsel %vm458, %v683, 0.0
    %685 = vadd.xlane.f32.xlu0 %v684
    %v686 = vpop.xlane.xlu0 %685
    %v687 = vrot.slane %v686, 4
    %v688 = vadd.f32 %v686, %v687
    %v689 = vrot.slane %v688, 2
    %v690 = vadd.f32 %v688, %v689
    %v691 = vrot.slane %v690, 1
    %v692 = vadd.f32 %v690, %v691
    %s693 = vtos %v692
    %v694 = vstv %s693
    %v695 = vmul.f32 %v694, %v155
    %v696 = vadd.f32 %v571, %v680
    %v697 = vsub.f32 %v572, %v680
    %s698 = scalar_lea.vmem %s10, 128
    %v699 = vld [vmem:[%s698] sm:$0xff]
    %v700 = vld [vmem:[%s698 + $0x8] sm:$0xff]
    %v701 = vld [vmem:[%s698 + $0x10] sm:$0xff]
    %v702 = vld [vmem:[%s698 + $0x18] sm:$0xff]
    %v703 = vld [vmem:[%s698 + $0x20] sm:$0xff]
    %v704 = vld [vmem:[%s698 + $0x28] sm:$0xff]
    %v705 = vld [vmem:[%s698 + $0x30] sm:$0xff]
    %v706 = vld [vmem:[%s698 + $0x38] sm:$0xff]
    %s707 = scalar_lea.vmem %s11, 2
    %v708 = vld [vmem:[%s707] sm:$0x1]
    %v710 = vsel %vm458, %v697, 0
    %v713 = vsel %vm458, %v699, 0
    %v716 = vsel %vm458, %v700, 0
    %v719 = vsel %vm458, %v701, 0
    %v722 = vsel %vm458, %v702, 0
    %v725 = vsel %vm458, %v703, 0
    %v728 = vsel %vm458, %v704, 0
    %v731 = vsel %vm458, %v705, 0
    %v734 = vsel %vm458, %v706, 0
    %736 = vmatpush.xpose.msra.mxu0 0.0
    %737 = vmatpush.xpose.msra.mxu0 0.0
    %738 = vmatpush.xpose.msra.mxu0 0.0
    %739 = vmatpush.xpose.msra.mxu0 0.0
    %740 = vmatpush.xpose.msra.mxu0 0.0
    %741 = vmatpush.xpose.msra.mxu0 0.0
    %742 = vmatpush.xpose.msra.mxu0 0.0
    %743 = vmatpush.xpose.msra.mxu0 0.0
    %744 = vmatpush.xpose.msra.mxu0 %v734
    %745 = vmatpush.xpose.msra.mxu0 %v731
    %746 = vmatpush.xpose.msra.mxu0 %v728
    %747 = vmatpush.xpose.msra.mxu0 %v725
    %748 = vmatpush.xpose.msra.mxu0 %v722
    %749 = vmatpush.xpose.msra.mxu0 %v719
    %750 = vmatpush.xpose.msra.mxu0 %v716
    %751 = vmatpush.xpose.msra.mxu0 %v713
    %752 = vmatmul.f32.gmra.mxu0 %v710
    %v753 = vpop.f32.mrf.mxu0
    %v754 = vadd.f32 0.0, %v753
    %755 = vdwg.mxu0
    %v756 = vmul.f32 %v754, 2.0
    %v758 = vperm.slane %v708, 0
    %v760 = vsub.f32 %v758, %v756
    %v761 = vsel %vm88, %v760, inf
    %762 = vmin.xlane.f32.xlu0 %v761
    %v763 = vpop.xlane.xlu0 %762
    %vm764 = vcmp.le.f32.partialorder %v760, %v763
    %v765 = vsel %vm764, %v448, 64
    %v766 = vsel %vm88, %v765, 2147483647
    %v767 = vand.u32 %v766, 65535
    %v768 = vshra.s32 %v766, 16
    %v769 = vcvt.s32.f32 %v767
    %v770 = vcvt.s32.f32 %v768
    %771 = vmin.xlane.f32.xlu0 %v770
    %v772 = vpop.xlane.xlu0 %771
    %vm773 = vcmp.eq.f32.partialorder %v770, %v772
    %v774 = vsel %vm773, %v769, inf
    %775 = vmin.xlane.f32.xlu0 %v774
    %v776 = vpop.xlane.xlu0 %775
    %v777 = vcvt.f32.s32 %v776
    %v778 = vcvt.f32.s32 %v772
    %v779 = vshll.u32 %v778, 16
    %v780 = vadd.s32 %v779, %v777
    %vm781 = vcmp.eq.s32.totalorder %v448, %v780
    %v782 = vsel %vm781, 1, 0
    %v783 = vcvt.s32.f32 %v782
    %v785 = vsel %vm88, %v783, 0
    %787 = vmatpush.msra.mxu0 0.0
    %788 = vmatpush.msra.mxu0 0.0
    %789 = vmatpush.msra.mxu0 0.0
    %790 = vmatpush.msra.mxu0 0.0
    %791 = vmatpush.msra.mxu0 0.0
    %792 = vmatpush.msra.mxu0 0.0
    %793 = vmatpush.msra.mxu0 0.0
    %794 = vmatpush.msra.mxu0 0.0
    %795 = vmatpush.msra.mxu0 %v706
    %796 = vmatpush.msra.mxu0 %v705
    %797 = vmatpush.msra.mxu0 %v704
    %798 = vmatpush.msra.mxu0 %v703
    %799 = vmatpush.msra.mxu0 %v702
    %800 = vmatpush.msra.mxu0 %v701
    %801 = vmatpush.msra.mxu0 %v700
    %802 = vmatpush.msra.mxu0 %v699
    %803 = vmatmul.f32.gmra.mxu0 %v785
    %v804 = vpop.f32.mrf.mxu0
    %v805 = vadd.f32 0.0, %v804
    %806 = vdwg.mxu0
    %v807 = vsub.f32 %v805, %v697
    %v808 = vmul.f32 %v807, %v807
    %v809 = vsel %vm458, %v808, 0.0
    %810 = vadd.xlane.f32.xlu0 %v809
    %v811 = vpop.xlane.xlu0 %810
    %v812 = vrot.slane %v811, 4
    %v813 = vadd.f32 %v811, %v812
    %v814 = vrot.slane %v813, 2
    %v815 = vadd.f32 %v813, %v814
    %v816 = vrot.slane %v815, 1
    %v817 = vadd.f32 %v815, %v816
    %s818 = vtos %v817
    %v819 = vstv %s818
    %v820 = vmul.f32 %v819, %v155
    %v821 = vadd.f32 %v696, %v805
    %vm822 = vcmask 7168
    %v823 = vsel %vm822, %v530, %v655
    %vm824 = vcmask 15360
    %v825 = vsel %vm824, %v823, %v780
    %vm826 = vcmask 23552
    %827 = vst.msk [vmem:[%s15] sm:$0xff] %vm826, %v825
    %v828 = vsel %vm822, %v570, %v695
    %v829 = vsel %vm824, %v828, %v820
    %vm830 = vcmask 16384
    %831 = vst.msk [vmem:[#allocation4] sm:$0x1] %vm830, %v829
    %833 = vrot.lane.b32.xlu0 %v680, 16
    %v834 = vpop.permute.xlu0 %833
    %837 = vrot.lane.b32.xlu0 %v805, 32
    %v838 = vpop.permute.xlu0 %837
    %v840 = vsel %vm458, %v555, %v834
    %vm841 = vcmask 261120
    %v842 = vsel %vm841, %v840, %v838
    %vm843 = vcmask 392192
    %844 = vst.msk [vmem:[#allocation6] sm:$0xff] %vm843, %v842
    %v845 = vld [vmem:[%s12] sm:$0xff]
    %v846 = vld [vmem:[%s12 + $0x8] sm:$0xff]
    %v847 = vld [vmem:[%s13] sm:$0x1]
    %v849 = vperm.slane %v847, 0
    %v852 = vsel %vm458, %v821, 0
    %854 = vmatpush.msra.mxu0 0.0
    %855 = vmatpush.msra.mxu0 0.0
    %856 = vmatpush.msra.mxu0 0.0
    %857 = vmatpush.msra.mxu0 0.0
    %858 = vmatpush.msra.mxu0 0.0
    %859 = vmatpush.msra.mxu0 0.0
    %860 = vmatpush.msra.mxu0 0.0
    %861 = vmatpush.msra.mxu0 0.0
    %862 = vmatpush.msra.mxu0 0.0
    %863 = vmatpush.msra.mxu0 0.0
    %864 = vmatpush.msra.mxu0 0.0
    %865 = vmatpush.msra.mxu0 0.0
    %866 = vmatpush.msra.mxu0 0.0
    %867 = vmatpush.msra.mxu0 0.0
    %868 = vmatpush.msra.mxu0 %v846
    %869 = vmatpush.msra.mxu0 %v845
    %870 = vmatmul.f32.gmra.mxu0 %v852
    %v871 = vpop.f32.mrf.mxu0
    %v872 = vadd.f32 %v849, %v871
    %873 = vdwg.mxu0
    %874 = vst.msk [vmem:[#allocation2] sm:$0xff] %vm88, %v872
    // Predicated region
    $region58: #{tpu_custom_call.1} parent=1 // pred_check
      _
    $region59: #{tpu_custom_call.1} parent=1 // pred_check_branch
      %876 = sbr.rel (0) target = $region61
    $region60: #{tpu_custom_call.1} parent=1 // pred_region
      %878 = vsyncadd [#allocation3], 0
      %s880 = sshll.u32 [#allocation2], 4
      %s881 = int_to_ptr.vmem [resolvable:$true] %s880
      %s882 = sshll.u32 %s14, 4
      %s883 = int_to_ptr.hbm [resolvable:$true] %s882
      %885 = dma.vmem_to_hbm [thread:$0]  %s881, 128, %s883, [#allocation3]
    $region61: #{tpu_custom_call.1} parent=1 // pred_fallthru
      _
    // Predicated region
    $region62: #{tpu_custom_call.1} parent=1 // pred_check
      _
    $region63: #{tpu_custom_call.1} parent=1 // pred_check_branch
      %887 = sbr.rel (0) target = $region65
    $region64: #{tpu_custom_call.1} parent=1 // pred_region
      _
    $region65: #{tpu_custom_call.1} parent=1 // pred_fallthru
      _
    // Predicated region
    $region66: #{tpu_custom_call.1} parent=1 // pred_check
      _
    $region67: #{tpu_custom_call.1} parent=1 // pred_check_branch
      %889 = sbr.rel (0) target = $region69
    $region68: #{tpu_custom_call.1} parent=1 // pred_region
      %891 = vsyncadd [#allocation5], 0
      %s893 = sshll.u32 [#allocation4], 4
      %s894 = int_to_ptr.vmem [resolvable:$true] %s893
      %s895 = sshll.u32 %s16, 4
      %s896 = int_to_ptr.hbm [resolvable:$true] %s895
      %898 = dma.vmem_to_hbm [thread:$0]  %s894, 16, %s896, [#allocation5]
    $region69: #{tpu_custom_call.1} parent=1 // pred_fallthru
      _
    // Predicated region
    $region70: #{tpu_custom_call.1} parent=1 // pred_check
      _
    $region71: #{tpu_custom_call.1} parent=1 // pred_check_branch
      %900 = sbr.rel (0) target = $region73
    $region72: #{tpu_custom_call.1} parent=1 // pred_region
      %902 = vsyncadd [#allocation5], 0
      %s904 = sshll.u32 [#allocation6], 4
      %s905 = int_to_ptr.vmem [resolvable:$true] %s904
      %s906 = sshll.u32 %s17, 4
      %s907 = int_to_ptr.hbm [resolvable:$true] %s906
      %909 = dma.vmem_to_hbm [thread:$0]  %s905, 128, %s907, [#allocation5]
    $region73: #{tpu_custom_call.1} parent=1 // pred_fallthru
      _
    // Predicated region
    $region74: #{tpu_custom_call.1} parent=1 // pred_check
      _
    $region75: #{tpu_custom_call.1} parent=1 // pred_check_branch
      %911 = sbr.rel (0) target = $region77
    $region76: #{tpu_custom_call.1} parent=1 // pred_region
      %913 = dma.done [#allocation3], 128
    $region77: #{tpu_custom_call.1} parent=1 // pred_fallthru
      _
    // Predicated region
    $region78: #{tpu_custom_call.1} parent=1 // pred_check
      _
    $region79: #{tpu_custom_call.1} parent=1 // pred_check_branch
      %915 = sbr.rel (0) target = $region81
    $region80: #{tpu_custom_call.1} parent=1 // pred_region
      _
    $region81: #{tpu_custom_call.1} parent=1 // pred_fallthru
      _
    // Predicated region
    $region82: #{tpu_custom_call.1} parent=1 // pred_check
      _
    $region83: #{tpu_custom_call.1} parent=1 // pred_check_branch
      %917 = sbr.rel (0) target = $region85
    $region84: #{tpu_custom_call.1} parent=1 // pred_region
      %919 = dma.done [#allocation5], 16
    $region85: #{tpu_custom_call.1} parent=1 // pred_fallthru
      _
    // Predicated region
    $region86: #{tpu_custom_call.1} parent=1 // pred_check
      _
    $region87: #{tpu_custom_call.1} parent=1 // pred_check_branch
      %921 = sbr.rel (0) target = $region89
    $region88: #{tpu_custom_call.1} parent=1 // pred_region
      %923 = dma.done [#allocation5], 128
    $region89: #{tpu_custom_call.1} parent=1 // pred_fallthru
      _
    %924 = vsyncpa [#allocation3], 1
    %925 = vsyncpa [#allocation5], 1

</llo_original>
